<compile_context>
chip_gen: v7x
topology: tpu7x:2x2x1
jax: 0.10.0
libtpu: 0.0.40
codegen_flags: <defaults>
</compile_context>

<pallas_src>
import functools

import jax
import jax.numpy as jnp
from jax.experimental import pallas as pl
from jax.experimental.pallas import tpu as pltpu

_LANES = 128
_TARGET_BLOCK_BYTES = 2 * 1024 * 1024   # 2 MiB/block; 4x (in+out, double-buffered) = 8 MiB VMEM.
_MIN_SPLIT_STEP_BYTES = 256 * 1024      # never shrink per-step DMAs below ~256 KiB when splitting.


def _h_swish_kernel(x_ref, o_ref):
    # h_swish(x) = x * clip(x/6 + 0.5, 0, 1)  (== x * ReLU6(x+3)/6)
    x = x_ref[...].astype(jnp.float32)
    hs = jnp.clip(x * (1.0 / 6.0) + 0.5, 0.0, 1.0)
    o_ref[...] = (x * hs).astype(o_ref.dtype)


def _h_swish_jnp(x):
    # Plain-jnp path for the <128-element lane tail / tiny tensors.
    xf = x.astype(jnp.float32)
    return (xf * jnp.clip(xf * (1.0 / 6.0) + 0.5, 0.0, 1.0)).astype(x.dtype)


def _num_tensorcores() -> int:
    """Best-effort TensorCores-per-chip (v7x = 2, everything else = 1)."""
    try:
        kind = (jax.devices()[0].device_kind or "").lower()
    except Exception:
        return 1
    return 2 if "v7" in kind else 1


def _block_rows(rows: int, itemsize: int) -> int:
    # Minimum sublane multiple for the dtype's physical tiling:
    # f32 -> 8, bf16/fp16 -> 16, int8/fp8 -> 32.
    sub_mult = 8 * max(1, 4 // itemsize)

    # Size the block by bytes (~2 MiB) so every dtype gets the same
    # HBM-roofline amortization of the ~0.35 us/step pipeline overhead.
    tr = max(sub_mult,
             (_TARGET_BLOCK_BYTES // (_LANES * itemsize)) // sub_mult * sub_mult)
    tr = min(tr, rows)   # tr == rows (full extent) is always a legal block dim.

    # v7x megacore only: make sure EACH of the 2 TensorCores gets >=2 pipeline
    # steps, but only when every step stays >= ~256 KiB.  Single-TC v5e/v6e
    # never split — a forced split there is pure per-step overhead.
    num_tc = _num_tensorcores()
    if num_tc > 1:
        min_steps = 2 * num_tc
        min_rows_per_step = max(sub_mult, _MIN_SPLIT_STEP_BYTES // (_LANES * itemsize))
        if pl.cdiv(rows, tr) < min_steps and rows >= min_steps * min_rows_per_step:
            split = pl.cdiv(rows, min_steps)
            tr = ((split + sub_mult - 1) // sub_mult) * sub_mult
    return tr


def _h_swish_bulk(x2d: jax.Array, *, alias_input: bool) -> jax.Array:
    rows, _ = x2d.shape
    itemsize = jnp.dtype(x2d.dtype).itemsize
    tr = _block_rows(rows, itemsize)
    grid = (pl.cdiv(rows, tr),)

    extra = {"input_output_aliases": {0: 0}} if alias_input else {}
    return pl.pallas_call(
        _h_swish_kernel,
        out_shape=jax.ShapeDtypeStruct((rows, _LANES), x2d.dtype),
        grid_spec=pltpu.PrefetchScalarGridSpec(
            num_scalar_prefetch=0,
            grid=grid,
            in_specs=[pl.BlockSpec((tr, _LANES), lambda i: (i, 0))],
            out_specs=pl.BlockSpec((tr, _LANES), lambda i: (i, 0)),
        ),
        compiler_params=pltpu.CompilerParams(
            dimension_semantics=("parallel",),
        ),
        **extra,
    )(x2d)


@functools.partial(jax.jit, static_argnames=("donate_input",))
def h_swish(x: jax.Array, *, donate_input: bool = False) -> jax.Array:
    """Elementwise h_swish over an NCHW tensor via a Pallas TPU kernel.

    donate_input=True adds input_output_aliases={0: 0}; only use it when x's
    buffer is dead after this call (e.g. a donated/intermediate buffer),
    otherwise XLA inserts a defensive copy that costs more than it saves.
    """
    orig_shape = x.shape
    flat = x.reshape(-1)              # bitcast under jit — no HBM copy
    n = flat.shape[0]
    bulk_n = (n // _LANES) * _LANES

    if bulk_n == 0:
        # Tiny (<128-element) tensor: not worth a kernel launch.
        return _h_swish_jnp(flat).reshape(orig_shape)

    rows = bulk_n // _LANES
    out_bulk = _h_swish_bulk(
        flat[:bulk_n].reshape(rows, _LANES), alias_input=donate_input
    ).reshape(-1)

    if bulk_n == n:
        # Common path for NCHW activations (N*C*H*W % 128 == 0): exactly 2N
        # bytes of HBM traffic, no pad/unpad/slice copies at all.
        return out_bulk.reshape(orig_shape)

    # Rare ragged path: the <=127-element lane tail is computed with plain jnp
    # (never padding the full tensor); only the reassembling concatenate below
    # touches the bulk output again.
    # TODO(synk): for a truly zero-overhead ragged path (and to beat the
    # 2N-byte standalone floor in general), fuse h_swish into the producing
    # conv/matmul kernel rather than running it standalone.
    tail = _h_swish_jnp(flat[bulk_n:])
    return jnp.concatenate([out_bulk, tail]).reshape(orig_shape)


def _h_swish_ref(x):
    return x * (jnp.clip(x + 3.0, 0.0, 6.0) / 6.0)


if __name__ == "__main__":
    # NCHW, matching the PyTorch module's conv-style input convention.
    key = jax.random.PRNGKey(0)
    x = jax.random.normal(key, (2, 4, 16, 16), dtype=jnp.float32) * 4.0

    out = jax.block_until_ready(h_swish(x))
    ref = _h_swish_ref(x)
    assert out.shape == x.shape and out.dtype == x.dtype
    assert jnp.allclose(out, ref, atol=1e-5, rtol=1e-5), "mismatch vs reference"

    # Also exercise the ragged (n % 128 != 0) tail path.
    x2 = jax.random.normal(jax.random.PRNGKey(1), (2, 3, 7, 7), dtype=jnp.float32) * 4.0
    out2 = jax.block_until_ready(h_swish(x2))
    assert out2.shape == x2.shape and out2.dtype == x2.dtype
    assert jnp.allclose(out2, _h_swish_ref(x2), atol=1e-5, rtol=1e-5), "mismatch (ragged tail)"

    print("KERNEL_OK")
</pallas_src>

<mosaic_0001>
module attributes {stable_mosaic.version = 11 : i64} {
  func.func @_h_swish_kernel(%arg0: i32, %arg1: memref<16x128xf32, #tpu.memory_space<vmem>>, %arg2: memref<16x128xf32, #tpu.memory_space<vmem>>) attributes {dimension_semantics = [#tpu.dimension_semantics<parallel>], iteration_bounds = array<i64: 1>, scalar_prefetch = 0 : i64, scratch_operands = 0 : i64, tpu.core_type = #tpu.core_type<tc>, window_params = [{transform_indices = @transform_0, window_bounds = array<i64: 16, 128>}, {transform_indices = @transform_1, window_bounds = array<i64: 16, 128>}]} {
    %c0 = arith.constant 0 : index
    %c0_0 = arith.constant 0 : index
    %0 = vector.load %arg1[%c0, %c0_0] : memref<16x128xf32, #tpu.memory_space<vmem>>, vector<16x128xf32>
    %cst = arith.constant 0.166666672 : f32
    %1 = vector.broadcast %cst : f32 to vector<16x128xf32>
    %2 = arith.mulf %0, %1 : vector<16x128xf32>
    %cst_1 = arith.constant 5.000000e-01 : f32
    %3 = vector.broadcast %cst_1 : f32 to vector<16x128xf32>
    %4 = arith.addf %2, %3 : vector<16x128xf32>
    %cst_2 = arith.constant 0.000000e+00 : f32
    %cst_3 = arith.constant 1.000000e+00 : f32
    %5 = vector.broadcast %cst_2 : f32 to vector<16x128xf32>
    %6 = arith.maximumf %5, %4 : vector<16x128xf32>
    %7 = vector.broadcast %cst_3 : f32 to vector<16x128xf32>
    %8 = arith.minimumf %7, %6 : vector<16x128xf32>
    %9 = arith.mulf %0, %8 : vector<16x128xf32>
    %c0_4 = arith.constant 0 : index
    %c0_5 = arith.constant 0 : index
    %10 = vector.load %arg2[%c0_4, %c0_5] : memref<16x128xf32, #tpu.memory_space<vmem>>, vector<16x128xf32>
    tpu.vector_store %arg2[%c0_4, %c0_5], %9 {strides = array<i32>} : memref<16x128xf32, #tpu.memory_space<vmem>>, vector<16x128xf32>,
    return
  }
  func.func @transform_0(%arg0: i32) -> (i32, i32) {
    %c0_i32 = arith.constant 0 : i32
    %c0_i32_0 = arith.constant 0 : i32
    return %arg0, %c0_i32 : i32, i32
  }
  func.func @transform_1(%arg0: i32) -> (i32, i32) {
    %c0_i32 = arith.constant 0 : i32
    %c0_i32_0 = arith.constant 0 : i32
    return %arg0, %c0_i32 : i32, i32
  }
}

</mosaic_0001>

<llo_original>
// kernel: h_swish.1
$region0: #{h_swish.1}
  #allocation0 [shape = 'u32[]', space=smem, size = 0x4, offset = 0x4, fixed_abs, tag = 'smem constant byte address 0x4 - core index']
  #allocation1 [shape = 'u32[144,128]{1,0:T(1,128)}', space=vmem, size = 0x12000, scoped, tag = 'internal scratch']
  %s0 = inlined_call_operand.vmem [shape: f32[16,128], index: 0, kind: input, shape index: {}]
  %s1 = inlined_call_operand.vmem [shape: f32[16,128], index: 1, kind: output, shape index: {}]
  %s2 = sld [smem:[#allocation0]]
  $region14: #{h_swish.1} parent=0
    _
  %s4 = ssub.s32 1, %s2
  %s5 = scalar_select 0, %s4, %s2
  // Predicated region
  $region2: #{h_swish.1} parent=0 // pred_check
    _
  $region3: #{h_swish.1} parent=0 // pred_check_branch
    %7 = sbr.rel (0) target = $region5
  $region4: #{h_swish.1} parent=0 // pred_region
    _
  $region5: #{h_swish.1} parent=0 // pred_fallthru
    _
  %v8 = vld [vmem:[%s0] sm:$0xff]
  %v9 = vld [vmem:[%s0 + $0x8] sm:$0xff]
  %v10 = vmul.f32 %v8, 0.16666667
  %v11 = vmul.f32 %v9, 0.16666667
  %v12 = vadd.f32 %v10, 0.5
  %v13 = vadd.f32 %v11, 0.5
  %v14 = vmax.f32 %v12, 0.0
  %v15 = vmax.f32 %v13, 0.0
  %v16 = vmin.f32 %v14, 1.0
  %v17 = vmin.f32 %v15, 1.0
  %v18 = vmul.f32 %v8, %v16
  %v19 = vmul.f32 %v9, %v17
  %20 = vst [vmem:[%s1] sm:$0xff] %v18
  %21 = vst [vmem:[%s1 + $0x8] sm:$0xff] %v19
  // Predicated region
  $region6: #{h_swish.1} parent=0 // pred_check
    _
  $region7: #{h_swish.1} parent=0 // pred_check_branch
    %23 = sbr.rel (0) target = $region9
  $region8: #{h_swish.1} parent=0 // pred_region
    _
  $region9: #{h_swish.1} parent=0 // pred_fallthru
    _
  // Predicated region
  $region10: #{h_swish.1} parent=0 // pred_check
    _
  $region11: #{h_swish.1} parent=0 // pred_check_branch
    %25 = sbr.rel (0) target = $region13
  $region12: #{h_swish.1} parent=0 // pred_region
    _
  $region13: #{h_swish.1} parent=0 // pred_fallthru
    _

</llo_original>
